<compile_context>
chip_gen: v6e
topology: v6e:2x2x1
jax: 0.10.0
libtpu: 0.0.40
codegen_flags: <defaults>
</compile_context>

<pallas_src>
import functools

import jax
import jax.numpy as jnp
from jax.experimental import pallas as pl
from jax.experimental.pallas import tpu as pltpu

# --- model hyper-params (mirrors Model.__init__; small embed dim "as-if pretrained") ---
KERNEL_SIZE = 3      # only conv1 (kernel height 3 x embed) is used by forward()
KERNEL_NUM = 16
NUM_CLASS = 2


def textcnn_kernel(emb_ref, convw_ref, convb_ref, fcw_ref, fcb_ref, out_ref,
                   *, seq_len, batch, ksize, embed):
    """Whole-model hot path: conv (valid, width==E) + ReLU + max-pool + FC + log_softmax.

    emb_ref:   (H*S, E) bf16  embedded tokens, row index = h*S + s (h=batch pos, s=seq pos)
    convw_ref: (K*E, C) bf16  conv1 weight, rows grouped by kernel tap k
    convb_ref: (1, C)    f32  conv1 bias
    fcw_ref:   (C, num_class) f32  fc weight with the x3-concat folded (summed) in
    fcb_ref:   (1, num_class) f32  fc bias
    out_ref:   (S, num_class) f32  log_softmax output
    """
    S = seq_len
    H = batch
    K = ksize
    E = embed
    Hout = H - K + 1
    span = Hout * S

    x = emb_ref[...]                                            # (H*S, E) bf16

    # K dense MXU matmuls over the full (H*S) row block, f32 accumulation.
    ys = [jnp.dot(x, convw_ref[k * E:(k + 1) * E, :],
                  preferred_element_type=jnp.float32)
          for k in range(K)]                                    # each (H*S, C) f32

    # Valid conv along H == shift-and-add of contiguous, sublane-aligned row blocks:
    #   conv[h_out*S + s] = sum_k ys[k][(h_out + k)*S + s]
    conv = ys[0][0:span, :]
    for k in range(1, K):
        conv = conv + ys[k][k * S: k * S + span, :]             # (Hout*S, C)
    conv = jnp.maximum(conv + convb_ref[...], 0.0)              # bias once + ReLU

    # max_pool1d over the conv "height" (= batch) axis, entirely in registers.
    pooled = conv[0:S, :]
    for h in range(1, Hout):
        pooled = jnp.maximum(pooled, conv[h * S:(h + 1) * S, :])    # (S, C)

    # cat((x1,x2,x3)) with x1==x2==x3 folded into fcw_ref; dropout = identity (inference).
    # TODO(synk): training-mode dropout RNG not implemented (inference semantics only).
    logits = jnp.dot(pooled, fcw_ref[...],
                     preferred_element_type=jnp.float32) + fcb_ref[...]  # (S, num_class)

    # Stable log_softmax(dim=1), kept in f32 (EUP exp/log).
    m = jnp.max(logits, axis=1, keepdims=True)
    lse = m + jnp.log(jnp.sum(jnp.exp(logits - m), axis=1, keepdims=True))
    out_ref[...] = logits - lse


@jax.jit
def textcnn_forward(tokens, emb_table, conv_w_torch, conv_b, fc_w_torch, fc_b):
    """tokens: (batch, seq) int32, params in torch layouts.
    Returns (seq, num_class) log-probs (matches torch output shape)."""
    H, S = tokens.shape
    E = emb_table.shape[1]
    C = conv_w_torch.shape[0]
    K = conv_w_torch.shape[2]
    num_class = fc_w_torch.shape[0]

    # Glue (embedding gather + layout plumbing) stays in plain JAX/XLA.
    emb_flat = jnp.take(emb_table, tokens, axis=0).reshape(H * S, E).astype(jnp.bfloat16)
    # torch conv weight (C, 1, K, E) -> (K, E, C) -> (K*E, C) so the kernel slices 2-D.
    conv_w = (jnp.transpose(conv_w_torch[:, 0], (1, 2, 0))
              .reshape(K * E, C).astype(jnp.bfloat16))                          # (K*E, C)
    conv_b2 = conv_b.reshape(1, C).astype(jnp.float32)
    # forward() feeds conv1 to all three branches -> fold concat into summed fc weight.
    fc_w_folded = (fc_w_torch[:, :C] + fc_w_torch[:, C:2 * C]
                   + fc_w_torch[:, 2 * C:]).T.astype(jnp.float32)               # (C, num_class)
    fc_b2 = fc_b.reshape(1, num_class).astype(jnp.float32)

    cost = pl.CostEstimate(
        flops=2 * H * S * E * C * K + 2 * S * C * num_class,
        transcendentals=S * (num_class + 1),
        bytes_accessed=(emb_flat.size * 2 + conv_w.size * 2
                        + (conv_b2.size + fc_w_folded.size + fc_b2.size) * 4
                        + S * num_class * 4))

    # Toy shapes: whole problem fits easily in VMEM; single grid point.
    # TODO(synk): for production shapes, add a grid over S with (8,128)-aligned
    # BlockSpec tiling and dimension_semantics=("parallel",) to shard across
    # v7x's two TensorCores and respect its 64 MiB VMEM.
    vmem = pl.BlockSpec(memory_space=pltpu.MemorySpace.VMEM)
    return pl.pallas_call(
        functools.partial(textcnn_kernel, seq_len=S, batch=H, ksize=K, embed=E),
        out_shape=jax.ShapeDtypeStruct((S, num_class), jnp.float32),
        in_specs=[vmem, vmem, vmem, vmem, vmem],
        out_specs=vmem,
        cost_estimate=cost,
    )(emb_flat, conv_w, conv_b2, fc_w_folded, fc_b2)


if __name__ == "__main__":
    # Small shapes consistent with the module (batch acts as the conv "height",
    # so it must be >= kernel height 3).
    vocab_size, batch, seq_len, embed_size = 50, 8, 16, 32

    key = jax.random.PRNGKey(0)
    k1, k2, k3, k4, k5, k6 = jax.random.split(key, 6)

    # Deterministic parameter init in torch layouts.
    emb_table = jax.random.normal(k1, (vocab_size, embed_size), jnp.float32) * 0.1
    conv_w_torch = jax.random.normal(
        k2, (KERNEL_NUM, 1, KERNEL_SIZE, embed_size), jnp.float32) * 0.05  # (C,1,K,E)
    conv_b = jax.random.normal(k3, (KERNEL_NUM,), jnp.float32) * 0.05
    fc_w_torch = jax.random.normal(
        k4, (NUM_CLASS, 3 * KERNEL_NUM), jnp.float32) * 0.05               # (2, 48)
    fc_b = jax.random.normal(k5, (NUM_CLASS,), jnp.float32) * 0.05

    tokens = jax.random.randint(k6, (batch, seq_len), 0, vocab_size, dtype=jnp.int32)

    out = textcnn_forward(tokens, emb_table, conv_w_torch, conv_b, fc_w_torch, fc_b)
    out = jax.block_until_ready(out)

    # Pure-JAX reference (same bf16 conv operands / f32 accumulation as the kernel).
    Hout = batch - KERNEL_SIZE + 1
    emb_bf = emb_table[tokens].astype(jnp.bfloat16)                        # (H, S, E)
    w_kec = jnp.transpose(conv_w_torch[:, 0], (1, 2, 0)).astype(jnp.bfloat16)  # (K, E, C)
    conv = sum(
        jnp.einsum('hse,ec->hsc', emb_bf[k:k + Hout], w_kec[k],
                   preferred_element_type=jnp.float32)
        for k in range(KERNEL_SIZE)) + conv_b                              # (Hout, S, C)
    pooled_ref = jnp.max(jax.nn.relu(conv), axis=0)                        # (S, C)
    feats_ref = jnp.concatenate([pooled_ref] * 3, axis=1)                  # (S, 3C)
    ref = jax.nn.log_softmax(feats_ref @ fc_w_torch.T + fc_b, axis=1)

    assert out.shape == (seq_len, NUM_CLASS), out.shape
    assert jnp.allclose(out, ref, atol=2e-3, rtol=2e-3), (out, ref)
    print("KERNEL_OK")
</pallas_src>

<mosaic_0001>
module attributes {stable_mosaic.version = 11 : i64} {
  func.func @textcnn_kernel(%arg0: memref<128x32xbf16, #tpu.memory_space<vmem>>, %arg1: memref<96x16xbf16, #tpu.memory_space<vmem>>, %arg2: memref<1x16xf32, #tpu.memory_space<vmem>>, %arg3: memref<16x2xf32, #tpu.memory_space<vmem>>, %arg4: memref<1x2xf32, #tpu.memory_space<vmem>>, %arg5: memref<16x2xf32, #tpu.memory_space<vmem>>) attributes {dimension_semantics = [], scalar_prefetch = 0 : i64, scratch_operands = 0 : i64, tpu.core_type = #tpu.core_type<tc>} {
    %c0 = arith.constant 0 : index
    %c0_0 = arith.constant 0 : index
    %0 = vector.load %arg0[%c0, %c0_0] : memref<128x32xbf16, #tpu.memory_space<vmem>>, vector<128x32xbf16>
    %c0_1 = arith.constant 0 : index
    %c0_2 = arith.constant 0 : index
    %1 = vector.load %arg1[%c0_1, %c0_2] : memref<96x16xbf16, #tpu.memory_space<vmem>>, vector<32x16xbf16>
    %cst = arith.constant dense<0.000000e+00> : vector<128x16xf32>
    %2 = tpu.matmul %0, %1, %cst {dimension_numbers = #tpu.dot_dimension_numbers<[1], [0], [0], [1], [0, 0, 1, 1], [], []>} : vector<128x32xbf16>, vector<32x16xbf16>, vector<128x16xf32> -> vector<128x16xf32>
    %c32 = arith.constant 32 : index
    %c0_3 = arith.constant 0 : index
    %3 = vector.load %arg1[%c32, %c0_3] : memref<96x16xbf16, #tpu.memory_space<vmem>>, vector<32x16xbf16>
    %cst_4 = arith.constant dense<0.000000e+00> : vector<128x16xf32>
    %4 = tpu.matmul %0, %3, %cst_4 {dimension_numbers = #tpu.dot_dimension_numbers<[1], [0], [0], [1], [0, 0, 1, 1], [], []>} : vector<128x32xbf16>, vector<32x16xbf16>, vector<128x16xf32> -> vector<128x16xf32>
    %c64 = arith.constant 64 : index
    %c0_5 = arith.constant 0 : index
    %5 = vector.load %arg1[%c64, %c0_5] : memref<96x16xbf16, #tpu.memory_space<vmem>>, vector<32x16xbf16>
    %cst_6 = arith.constant dense<0.000000e+00> : vector<128x16xf32>
    %6 = tpu.matmul %0, %5, %cst_6 {dimension_numbers = #tpu.dot_dimension_numbers<[1], [0], [0], [1], [0, 0, 1, 1], [], []>} : vector<128x32xbf16>, vector<32x16xbf16>, vector<128x16xf32> -> vector<128x16xf32>
    %7 = vector.extract_strided_slice %2 {offsets = [0, 0], sizes = [96, 16], strides = [1, 1]} : vector<128x16xf32> to vector<96x16xf32>
    %8 = vector.extract_strided_slice %4 {offsets = [16, 0], sizes = [96, 16], strides = [1, 1]} : vector<128x16xf32> to vector<96x16xf32>
    %9 = arith.addf %7, %8 : vector<96x16xf32>
    %10 = vector.extract_strided_slice %6 {offsets = [32, 0], sizes = [96, 16], strides = [1, 1]} : vector<128x16xf32> to vector<96x16xf32>
    %11 = arith.addf %9, %10 : vector<96x16xf32>
    %c0_7 = arith.constant 0 : index
    %c0_8 = arith.constant 0 : index
    %12 = vector.load %arg2[%c0_7, %c0_8] : memref<1x16xf32, #tpu.memory_space<vmem>>, vector<1x16xf32>
    %13 = vector.broadcast %12 : vector<1x16xf32> to vector<96x16xf32>
    %14 = arith.addf %11, %13 : vector<96x16xf32>
    %cst_9 = arith.constant 0.000000e+00 : f32
    %15 = vector.broadcast %cst_9 : f32 to vector<96x16xf32>
    %16 = arith.maximumf %14, %15 : vector<96x16xf32>
    %17 = vector.extract_strided_slice %16 {offsets = [0, 0], sizes = [16, 16], strides = [1, 1]} : vector<96x16xf32> to vector<16x16xf32>
    %18 = vector.extract_strided_slice %16 {offsets = [16, 0], sizes = [16, 16], strides = [1, 1]} : vector<96x16xf32> to vector<16x16xf32>
    %19 = arith.maximumf %17, %18 : vector<16x16xf32>
    %20 = vector.extract_strided_slice %16 {offsets = [32, 0], sizes = [16, 16], strides = [1, 1]} : vector<96x16xf32> to vector<16x16xf32>
    %21 = arith.maximumf %19, %20 : vector<16x16xf32>
    %22 = vector.extract_strided_slice %16 {offsets = [48, 0], sizes = [16, 16], strides = [1, 1]} : vector<96x16xf32> to vector<16x16xf32>
    %23 = arith.maximumf %21, %22 : vector<16x16xf32>
    %24 = vector.extract_strided_slice %16 {offsets = [64, 0], sizes = [16, 16], strides = [1, 1]} : vector<96x16xf32> to vector<16x16xf32>
    %25 = arith.maximumf %23, %24 : vector<16x16xf32>
    %26 = vector.extract_strided_slice %16 {offsets = [80, 0], sizes = [16, 16], strides = [1, 1]} : vector<96x16xf32> to vector<16x16xf32>
    %27 = arith.maximumf %25, %26 : vector<16x16xf32>
    %c0_10 = arith.constant 0 : index
    %c0_11 = arith.constant 0 : index
    %28 = vector.load %arg3[%c0_10, %c0_11] : memref<16x2xf32, #tpu.memory_space<vmem>>, vector<16x2xf32>
    %cst_12 = arith.constant dense<0.000000e+00> : vector<16x2xf32>
    %29 = tpu.matmul %27, %28, %cst_12 {dimension_numbers = #tpu.dot_dimension_numbers<[1], [0], [0], [1], [0, 0, 1, 1], [], []>} : vector<16x16xf32>, vector<16x2xf32>, vector<16x2xf32> -> vector<16x2xf32>
    %c0_13 = arith.constant 0 : index
    %c0_14 = arith.constant 0 : index
    %30 = vector.load %arg4[%c0_13, %c0_14] : memref<1x2xf32, #tpu.memory_space<vmem>>, vector<1x2xf32>
    %31 = vector.broadcast %30 : vector<1x2xf32> to vector<16x2xf32>
    %32 = arith.addf %29, %31 : vector<16x2xf32>
    %cst_15 = arith.constant dense<0xFF800000> : vector<16xf32>
    %33 = vector.multi_reduction <maximumf>, %32, %cst_15 [1] : vector<16x2xf32> to vector<16xf32>
    %34 = vector.shape_cast %33 : vector<16xf32> to vector<16x1xf32>
    %35 = vector.broadcast %34 : vector<16x1xf32> to vector<16x2xf32>
    %36 = arith.subf %32, %35 : vector<16x2xf32>
    %37 = math.exp %36 : vector<16x2xf32>
    %cst_16 = arith.constant dense<0.000000e+00> : vector<16xf32>
    %38 = vector.multi_reduction <add>, %37, %cst_16 [1] : vector<16x2xf32> to vector<16xf32>
    %39 = vector.shape_cast %38 : vector<16xf32> to vector<16x1xf32>
    %40 = math.log %39 : vector<16x1xf32>
    %41 = arith.addf %34, %40 : vector<16x1xf32>
    %42 = vector.broadcast %41 : vector<16x1xf32> to vector<16x2xf32>
    %43 = arith.subf %32, %42 : vector<16x2xf32>
    %c0_17 = arith.constant 0 : index
    %c0_18 = arith.constant 0 : index
    %44 = vector.load %arg5[%c0_17, %c0_18] : memref<16x2xf32, #tpu.memory_space<vmem>>, vector<16x2xf32>
    tpu.vector_store %arg5[%c0_17, %c0_18], %43 {strides = array<i32>} : memref<16x2xf32, #tpu.memory_space<vmem>>, vector<16x2xf32>,
    return
  }
}

</mosaic_0001>

<llo_original>
// kernel: textcnn_forward.1
$region0: #{textcnn_forward.1}
  #allocation0 [shape = 'u32[]', space=smem, size = 0x4, offset = 0x4, fixed_abs, tag = 'smem constant byte address 0x4 - core index']
  #allocation1 [shape = 'u32[144,128]{1,0:T(1,128)}', space=vmem, size = 0x12000, scoped, tag = 'internal scratch']
  %s0 = inlined_call_operand.vmem [shape: bf16[128,32], index: 0, kind: input, shape index: {}]
  %s1 = inlined_call_operand.vmem [shape: bf16[96,16], index: 1, kind: input, shape index: {}]
  %s2 = inlined_call_operand.vmem [shape: f32[1,16], index: 2, kind: input, shape index: {}]
  %s3 = inlined_call_operand.vmem [shape: f32[16,2], index: 3, kind: input, shape index: {}]
  %s4 = inlined_call_operand.vmem [shape: f32[1,2], index: 4, kind: input, shape index: {}]
  %s5 = inlined_call_operand.vmem [shape: f32[16,2], index: 5, kind: output, shape index: {}]
  %s6 = sld [smem:[#allocation0]]
  $region30: #{textcnn_forward.1} parent=0
    _
  %s8 = ssub.s32 1, %s6
  %s9 = scalar_select 0, %s8, %s6
  // Predicated region
  $region2: #{textcnn_forward.1} parent=0 // pred_check
    _
  $region3: #{textcnn_forward.1} parent=0 // pred_check_branch
    %11 = sbr.rel (0) target = $region5
  $region4: #{textcnn_forward.1} parent=0 // pred_region
    _
  $region5: #{textcnn_forward.1} parent=0 // pred_fallthru
    _
  // Predicated region
  $region6: #{textcnn_forward.1} parent=0 // pred_check
    _
  $region7: #{textcnn_forward.1} parent=0 // pred_check_branch
    %13 = sbr.rel (0) target = $region9
  $region8: #{textcnn_forward.1} parent=0 // pred_region
    _
  $region9: #{textcnn_forward.1} parent=0 // pred_fallthru
    _
  // Predicated region
  $region10: #{textcnn_forward.1} parent=0 // pred_check
    _
  $region11: #{textcnn_forward.1} parent=0 // pred_check_branch
    %15 = sbr.rel (0) target = $region13
  $region12: #{textcnn_forward.1} parent=0 // pred_region
    _
  $region13: #{textcnn_forward.1} parent=0 // pred_fallthru
    _
  // Predicated region
  $region14: #{textcnn_forward.1} parent=0 // pred_check
    _
  $region15: #{textcnn_forward.1} parent=0 // pred_check_branch
    %17 = sbr.rel (0) target = $region17
  $region16: #{textcnn_forward.1} parent=0 // pred_region
    _
  $region17: #{textcnn_forward.1} parent=0 // pred_fallthru
    _
  // Predicated region
  $region18: #{textcnn_forward.1} parent=0 // pred_check
    _
  $region19: #{textcnn_forward.1} parent=0 // pred_check_branch
    %19 = sbr.rel (0) target = $region21
  $region20: #{textcnn_forward.1} parent=0 // pred_region
    _
  $region21: #{textcnn_forward.1} parent=0 // pred_fallthru
    _
  %v21 = vld [vmem:[%s0] sm:$0xf]
  %v22 = vld [vmem:[%s0 + $0x4] sm:$0xf]
  %v23 = vld [vmem:[%s0 + $0x8] sm:$0xf]
  %v24 = vld [vmem:[%s0 + $0xc] sm:$0xf]
  %v25 = vld [vmem:[%s0 + $0x10] sm:$0xf]
  %v26 = vld [vmem:[%s0 + $0x14] sm:$0xf]
  %v27 = vld [vmem:[%s0 + $0x18] sm:$0xf]
  %v28 = vld [vmem:[%s0 + $0x1c] sm:$0xf]
  %v29 = vld [vmem:[%s0 + $0x20] sm:$0xf]
  %v30 = vld [vmem:[%s0 + $0x24] sm:$0xf]
  %v31 = vld [vmem:[%s0 + $0x28] sm:$0xf]
  %v32 = vld [vmem:[%s0 + $0x2c] sm:$0xf]
  %v33 = vld [vmem:[%s0 + $0x30] sm:$0xf]
  %v34 = vld [vmem:[%s0 + $0x34] sm:$0xf]
  %v35 = vld [vmem:[%s0 + $0x38] sm:$0xf]
  %v36 = vld [vmem:[%s0 + $0x3c] sm:$0xf]
  %v37 = vld [vmem:[%s1] sm:$0xf]
  %v38 = vld [vmem:[%s1 + $0x4] sm:$0xf]
  %v39 = vld [vmem:[%s1 + $0x8] sm:$0xf]
  %v40 = vld [vmem:[%s1 + $0xc] sm:$0xf]
  %v57 = vunpack.c.l.b16 %v21
  %v58 = vunpack.c.l.b16 %v22
  %v59 = vunpack.c.l.b16 %v23
  %v60 = vunpack.c.l.b16 %v24
  %v61 = vunpack.c.l.b16 %v25
  %v62 = vunpack.c.l.b16 %v26
  %v63 = vunpack.c.l.b16 %v27
  %v64 = vunpack.c.l.b16 %v28
  %v65 = vunpack.c.l.b16 %v29
  %v66 = vunpack.c.l.b16 %v30
  %v67 = vunpack.c.l.b16 %v31
  %v68 = vunpack.c.l.b16 %v32
  %v69 = vunpack.c.l.b16 %v33
  %v70 = vunpack.c.l.b16 %v34
  %v71 = vunpack.c.l.b16 %v35
  %v72 = vunpack.c.l.b16 %v36
  %v73 = vpack.c.b16 %v58, %v57
  %v74 = vpack.c.b16 %v60, %v59
  %v75 = vpack.c.b16 %v62, %v61
  %v76 = vpack.c.b16 %v64, %v63
  %v77 = vpack.c.b16 %v66, %v65
  %v78 = vpack.c.b16 %v68, %v67
  %v79 = vpack.c.b16 %v70, %v69
  %v80 = vpack.c.b16 %v72, %v71
  %v85 = vunpack.c.l.b16 %v37
  %v86 = vunpack.c.l.b16 %v38
  %v87 = vunpack.c.l.b16 %v39
  %v88 = vunpack.c.l.b16 %v40
  %v89 = vpack.c.b16 %v86, %v85
  %v90 = vpack.c.b16 %v88, %v87
  %vm93 = vcmask 261120
  %v95 = vsel %vm93, %v73, 0
  %v98 = vsel %vm93, %v74, 0
  %v101 = vsel %vm93, %v75, 0
  %v104 = vsel %vm93, %v76, 0
  %v107 = vsel %vm93, %v77, 0
  %v110 = vsel %vm93, %v78, 0
  %v113 = vsel %vm93, %v79, 0
  %v116 = vsel %vm93, %v80, 0
  %118 = vmatprep.subr.bf16.mxu0 0
  %119 = vmatpush1.bf16.msra.mxu0 0
  %120 = vmatprep.subr.bf16.mxu0 0
  %121 = vmatpush1.bf16.msra.mxu0 0
  %122 = vmatprep.subr.bf16.mxu0 0
  %123 = vmatpush1.bf16.msra.mxu0 0
  %124 = vmatprep.subr.bf16.mxu0 0
  %125 = vmatpush1.bf16.msra.mxu0 0
  %126 = vmatprep.subr.bf16.mxu0 0
  %127 = vmatpush1.bf16.msra.mxu0 0
  %128 = vmatprep.subr.bf16.mxu0 0
  %129 = vmatpush1.bf16.msra.mxu0 0
  %130 = vmatprep.subr.bf16.mxu0 0
  %131 = vmatpush1.bf16.msra.mxu0 %v90
  %132 = vmatprep.subr.bf16.mxu0 0
  %133 = vmatpush1.bf16.msra.mxu0 %v89
  %134 = vmatprep.subr.bf16.mxu0 0
  %135 = vmatpush2.bf16.msra.mxu0 0
  %136 = vmatprep.subr.bf16.mxu0 0
  %137 = vmatpush2.bf16.msra.mxu0 0
  %138 = vmatprep.subr.bf16.mxu0 0
  %139 = vmatpush2.bf16.msra.mxu0 0
  %140 = vmatprep.subr.bf16.mxu0 0
  %141 = vmatpush2.bf16.msra.mxu0 0
  %142 = vmatprep.subr.bf16.mxu0 0
  %143 = vmatpush2.bf16.msra.mxu0 0
  %144 = vmatprep.subr.bf16.mxu0 0
  %145 = vmatpush2.bf16.msra.mxu0 0
  %146 = vmatprep.subr.bf16.mxu0 0
  %147 = vmatpush2.bf16.msra.mxu0 0
  %148 = vmatprep.subr.bf16.mxu0 0
  %149 = vmatpush2.bf16.msra.mxu0 0
  %150 = vmatprep.mubr.bf16.mxu0 0
  %151 = vmatmul.mubr.bf16.gmra.mxu0 %v95
  %v152 = vpop.f32.mrf.mxu0
  %v153 = vadd.f32 0.0, %v152
  %v154 = vpop.f32.mrf.mxu0
  %v155 = vpop.f32.mrf.mxu0
  %v156 = vadd.f32 0.0, %v155
  %v157 = vpop.f32.mrf.mxu0
  %158 = vmatprep.mubr.bf16.mxu0 0
  %159 = vmatmul.mubr.bf16.gmra.mxu0 %v98
  %v160 = vpop.f32.mrf.mxu0
  %v161 = vadd.f32 0.0, %v160
  %v162 = vpop.f32.mrf.mxu0
  %v163 = vpop.f32.mrf.mxu0
  %v164 = vadd.f32 0.0, %v163
  %v165 = vpop.f32.mrf.mxu0
  %166 = vmatprep.mubr.bf16.mxu0 0
  %167 = vmatmul.mubr.bf16.gmra.mxu0 %v101
  %v168 = vpop.f32.mrf.mxu0
  %v169 = vadd.f32 0.0, %v168
  %v170 = vpop.f32.mrf.mxu0
  %v171 = vpop.f32.mrf.mxu0
  %v172 = vadd.f32 0.0, %v171
  %v173 = vpop.f32.mrf.mxu0
  %174 = vmatprep.mubr.bf16.mxu0 0
  %175 = vmatmul.mubr.bf16.gmra.mxu0 %v104
  %v176 = vpop.f32.mrf.mxu0
  %v177 = vadd.f32 0.0, %v176
  %v178 = vpop.f32.mrf.mxu0
  %v179 = vpop.f32.mrf.mxu0
  %v180 = vadd.f32 0.0, %v179
  %v181 = vpop.f32.mrf.mxu0
  %182 = vmatprep.mubr.bf16.mxu0 0
  %183 = vmatmul.mubr.bf16.gmra.mxu0 %v107
  %v184 = vpop.f32.mrf.mxu0
  %v185 = vadd.f32 0.0, %v184
  %v186 = vpop.f32.mrf.mxu0
  %v187 = vpop.f32.mrf.mxu0
  %v188 = vadd.f32 0.0, %v187
  %v189 = vpop.f32.mrf.mxu0
  %190 = vmatprep.mubr.bf16.mxu0 0
  %191 = vmatmul.mubr.bf16.gmra.mxu0 %v110
  %v192 = vpop.f32.mrf.mxu0
  %v193 = vadd.f32 0.0, %v192
  %v194 = vpop.f32.mrf.mxu0
  %v195 = vpop.f32.mrf.mxu0
  %v196 = vadd.f32 0.0, %v195
  %v197 = vpop.f32.mrf.mxu0
  %198 = vmatprep.mubr.bf16.mxu0 0
  %199 = vmatmul.mubr.bf16.gmra.mxu0 %v113
  %v200 = vpop.f32.mrf.mxu0
  %v201 = vpop.f32.mrf.mxu0
  %v202 = vpop.f32.mrf.mxu0
  %v203 = vpop.f32.mrf.mxu0
  %204 = vmatprep.mubr.bf16.mxu0 0
  %205 = vmatmul.mubr.bf16.gmra.mxu0 %v116
  %v206 = vpop.f32.mrf.mxu0
  %v207 = vpop.f32.mrf.mxu0
  %v208 = vpop.f32.mrf.mxu0
  %v209 = vpop.f32.mrf.mxu0
  %210 = vdwg.mxu0
  %v211 = vld [vmem:[%s1 + $0x10] sm:$0xf]
  %v212 = vld [vmem:[%s1 + $0x14] sm:$0xf]
  %v213 = vld [vmem:[%s1 + $0x18] sm:$0xf]
  %v214 = vld [vmem:[%s1 + $0x1c] sm:$0xf]
  %v219 = vunpack.c.l.b16 %v211
  %v220 = vunpack.c.l.b16 %v212
  %v221 = vunpack.c.l.b16 %v213
  %v222 = vunpack.c.l.b16 %v214
  %v223 = vpack.c.b16 %v220, %v219
  %v224 = vpack.c.b16 %v222, %v221
  %227 = vmatprep.subr.bf16.mxu0 0
  %228 = vmatpush1.bf16.msra.mxu0 0
  %229 = vmatprep.subr.bf16.mxu0 0
  %230 = vmatpush1.bf16.msra.mxu0 0
  %231 = vmatprep.subr.bf16.mxu0 0
  %232 = vmatpush1.bf16.msra.mxu0 0
  %233 = vmatprep.subr.bf16.mxu0 0
  %234 = vmatpush1.bf16.msra.mxu0 0
  %235 = vmatprep.subr.bf16.mxu0 0
  %236 = vmatpush1.bf16.msra.mxu0 0
  %237 = vmatprep.subr.bf16.mxu0 0
  %238 = vmatpush1.bf16.msra.mxu0 0
  %239 = vmatprep.subr.bf16.mxu0 0
  %240 = vmatpush1.bf16.msra.mxu0 %v224
  %241 = vmatprep.subr.bf16.mxu0 0
  %242 = vmatpush1.bf16.msra.mxu0 %v223
  %243 = vmatprep.subr.bf16.mxu0 0
  %244 = vmatpush2.bf16.msra.mxu0 0
  %245 = vmatprep.subr.bf16.mxu0 0
  %246 = vmatpush2.bf16.msra.mxu0 0
  %247 = vmatprep.subr.bf16.mxu0 0
  %248 = vmatpush2.bf16.msra.mxu0 0
  %249 = vmatprep.subr.bf16.mxu0 0
  %250 = vmatpush2.bf16.msra.mxu0 0
  %251 = vmatprep.subr.bf16.mxu0 0
  %252 = vmatpush2.bf16.msra.mxu0 0
  %253 = vmatprep.subr.bf16.mxu0 0
  %254 = vmatpush2.bf16.msra.mxu0 0
  %255 = vmatprep.subr.bf16.mxu0 0
  %256 = vmatpush2.bf16.msra.mxu0 0
  %257 = vmatprep.subr.bf16.mxu0 0
  %258 = vmatpush2.bf16.msra.mxu0 0
  %259 = vmatprep.mubr.bf16.mxu0 0
  %260 = vmatmul.mubr.bf16.gmra.mxu0 %v95
  %v261 = vpop.f32.mrf.mxu0
  %v262 = vpop.f32.mrf.mxu0
  %v263 = vpop.f32.mrf.mxu0
  %v264 = vpop.f32.mrf.mxu0
  %265 = vmatprep.mubr.bf16.mxu0 0
  %266 = vmatmul.mubr.bf16.gmra.mxu0 %v98
  %v267 = vpop.f32.mrf.mxu0
  %v268 = vadd.f32 0.0, %v267
  %v269 = vpop.f32.mrf.mxu0
  %v270 = vpop.f32.mrf.mxu0
  %v271 = vadd.f32 0.0, %v270
  %v272 = vpop.f32.mrf.mxu0
  %273 = vmatprep.mubr.bf16.mxu0 0
  %274 = vmatmul.mubr.bf16.gmra.mxu0 %v101
  %v275 = vpop.f32.mrf.mxu0
  %v276 = vadd.f32 0.0, %v275
  %v277 = vpop.f32.mrf.mxu0
  %v278 = vpop.f32.mrf.mxu0
  %v279 = vadd.f32 0.0, %v278
  %v280 = vpop.f32.mrf.mxu0
  %281 = vmatprep.mubr.bf16.mxu0 0
  %282 = vmatmul.mubr.bf16.gmra.mxu0 %v104
  %v283 = vpop.f32.mrf.mxu0
  %v284 = vadd.f32 0.0, %v283
  %v285 = vpop.f32.mrf.mxu0
  %v286 = vpop.f32.mrf.mxu0
  %v287 = vadd.f32 0.0, %v286
  %v288 = vpop.f32.mrf.mxu0
  %289 = vmatprep.mubr.bf16.mxu0 0
  %290 = vmatmul.mubr.bf16.gmra.mxu0 %v107
  %v291 = vpop.f32.mrf.mxu0
  %v292 = vadd.f32 0.0, %v291
  %v293 = vpop.f32.mrf.mxu0
  %v294 = vpop.f32.mrf.mxu0
  %v295 = vadd.f32 0.0, %v294
  %v296 = vpop.f32.mrf.mxu0
  %297 = vmatprep.mubr.bf16.mxu0 0
  %298 = vmatmul.mubr.bf16.gmra.mxu0 %v110
  %v299 = vpop.f32.mrf.mxu0
  %v300 = vadd.f32 0.0, %v299
  %v301 = vpop.f32.mrf.mxu0
  %v302 = vpop.f32.mrf.mxu0
  %v303 = vadd.f32 0.0, %v302
  %v304 = vpop.f32.mrf.mxu0
  %305 = vmatprep.mubr.bf16.mxu0 0
  %306 = vmatmul.mubr.bf16.gmra.mxu0 %v113
  %v307 = vpop.f32.mrf.mxu0
  %v308 = vadd.f32 0.0, %v307
  %v309 = vpop.f32.mrf.mxu0
  %v310 = vpop.f32.mrf.mxu0
  %v311 = vadd.f32 0.0, %v310
  %v312 = vpop.f32.mrf.mxu0
  %313 = vmatprep.mubr.bf16.mxu0 0
  %314 = vmatmul.mubr.bf16.gmra.mxu0 %v116
  %v315 = vpop.f32.mrf.mxu0
  %v316 = vpop.f32.mrf.mxu0
  %v317 = vpop.f32.mrf.mxu0
  %v318 = vpop.f32.mrf.mxu0
  %319 = vdwg.mxu0
  %v320 = vld [vmem:[%s1 + $0x20] sm:$0xf]
  %v321 = vld [vmem:[%s1 + $0x24] sm:$0xf]
  %v322 = vld [vmem:[%s1 + $0x28] sm:$0xf]
  %v323 = vld [vmem:[%s1 + $0x2c] sm:$0xf]
  %v328 = vunpack.c.l.b16 %v320
  %v329 = vunpack.c.l.b16 %v321
  %v330 = vunpack.c.l.b16 %v322
  %v331 = vunpack.c.l.b16 %v323
  %v332 = vpack.c.b16 %v329, %v328
  %v333 = vpack.c.b16 %v331, %v330
  %336 = vmatprep.subr.bf16.mxu0 0
  %337 = vmatpush1.bf16.msra.mxu0 0
  %338 = vmatprep.subr.bf16.mxu0 0
  %339 = vmatpush1.bf16.msra.mxu0 0
  %340 = vmatprep.subr.bf16.mxu0 0
  %341 = vmatpush1.bf16.msra.mxu0 0
  %342 = vmatprep.subr.bf16.mxu0 0
  %343 = vmatpush1.bf16.msra.mxu0 0
  %344 = vmatprep.subr.bf16.mxu0 0
  %345 = vmatpush1.bf16.msra.mxu0 0
  %346 = vmatprep.subr.bf16.mxu0 0
  %347 = vmatpush1.bf16.msra.mxu0 0
  %348 = vmatprep.subr.bf16.mxu0 0
  %349 = vmatpush1.bf16.msra.mxu0 %v333
  %350 = vmatprep.subr.bf16.mxu0 0
  %351 = vmatpush1.bf16.msra.mxu0 %v332
  %352 = vmatprep.subr.bf16.mxu0 0
  %353 = vmatpush2.bf16.msra.mxu0 0
  %354 = vmatprep.subr.bf16.mxu0 0
  %355 = vmatpush2.bf16.msra.mxu0 0
  %356 = vmatprep.subr.bf16.mxu0 0
  %357 = vmatpush2.bf16.msra.mxu0 0
  %358 = vmatprep.subr.bf16.mxu0 0
  %359 = vmatpush2.bf16.msra.mxu0 0
  %360 = vmatprep.subr.bf16.mxu0 0
  %361 = vmatpush2.bf16.msra.mxu0 0
  %362 = vmatprep.subr.bf16.mxu0 0
  %363 = vmatpush2.bf16.msra.mxu0 0
  %364 = vmatprep.subr.bf16.mxu0 0
  %365 = vmatpush2.bf16.msra.mxu0 0
  %366 = vmatprep.subr.bf16.mxu0 0
  %367 = vmatpush2.bf16.msra.mxu0 0
  %368 = vmatprep.mubr.bf16.mxu0 0
  %369 = vmatmul.mubr.bf16.gmra.mxu0 %v95
  %v370 = vpop.f32.mrf.mxu0
  %v371 = vpop.f32.mrf.mxu0
  %v372 = vpop.f32.mrf.mxu0
  %v373 = vpop.f32.mrf.mxu0
  %374 = vmatprep.mubr.bf16.mxu0 0
  %375 = vmatmul.mubr.bf16.gmra.mxu0 %v98
  %v376 = vpop.f32.mrf.mxu0
  %v377 = vpop.f32.mrf.mxu0
  %v378 = vpop.f32.mrf.mxu0
  %v379 = vpop.f32.mrf.mxu0
  %380 = vmatprep.mubr.bf16.mxu0 0
  %381 = vmatmul.mubr.bf16.gmra.mxu0 %v101
  %v382 = vpop.f32.mrf.mxu0
  %v383 = vadd.f32 0.0, %v382
  %v384 = vpop.f32.mrf.mxu0
  %v385 = vpop.f32.mrf.mxu0
  %v386 = vadd.f32 0.0, %v385
  %v387 = vpop.f32.mrf.mxu0
  %388 = vmatprep.mubr.bf16.mxu0 0
  %389 = vmatmul.mubr.bf16.gmra.mxu0 %v104
  %v390 = vpop.f32.mrf.mxu0
  %v391 = vadd.f32 0.0, %v390
  %v392 = vpop.f32.mrf.mxu0
  %v393 = vpop.f32.mrf.mxu0
  %v394 = vadd.f32 0.0, %v393
  %v395 = vpop.f32.mrf.mxu0
  %396 = vmatprep.mubr.bf16.mxu0 0
  %397 = vmatmul.mubr.bf16.gmra.mxu0 %v107
  %v398 = vpop.f32.mrf.mxu0
  %v399 = vadd.f32 0.0, %v398
  %v400 = vpop.f32.mrf.mxu0
  %v401 = vpop.f32.mrf.mxu0
  %v402 = vadd.f32 0.0, %v401
  %v403 = vpop.f32.mrf.mxu0
  %404 = vmatprep.mubr.bf16.mxu0 0
  %405 = vmatmul.mubr.bf16.gmra.mxu0 %v110
  %v406 = vpop.f32.mrf.mxu0
  %v407 = vadd.f32 0.0, %v406
  %v408 = vpop.f32.mrf.mxu0
  %v409 = vpop.f32.mrf.mxu0
  %v410 = vadd.f32 0.0, %v409
  %v411 = vpop.f32.mrf.mxu0
  %412 = vmatprep.mubr.bf16.mxu0 0
  %413 = vmatmul.mubr.bf16.gmra.mxu0 %v113
  %v414 = vpop.f32.mrf.mxu0
  %v415 = vadd.f32 0.0, %v414
  %v416 = vpop.f32.mrf.mxu0
  %v417 = vpop.f32.mrf.mxu0
  %v418 = vadd.f32 0.0, %v417
  %v419 = vpop.f32.mrf.mxu0
  %420 = vmatprep.mubr.bf16.mxu0 0
  %421 = vmatmul.mubr.bf16.gmra.mxu0 %v116
  %v422 = vpop.f32.mrf.mxu0
  %v423 = vadd.f32 0.0, %v422
  %v424 = vpop.f32.mrf.mxu0
  %v425 = vpop.f32.mrf.mxu0
  %v426 = vadd.f32 0.0, %v425
  %v427 = vpop.f32.mrf.mxu0
  %428 = vdwg.mxu0
  %v429 = vadd.f32 %v153, %v268
  %v430 = vadd.f32 %v156, %v271
  %v431 = vadd.f32 %v161, %v276
  %v432 = vadd.f32 %v164, %v279
  %v433 = vadd.f32 %v169, %v284
  %v434 = vadd.f32 %v172, %v287
  %v435 = vadd.f32 %v177, %v292
  %v436 = vadd.f32 %v180, %v295
  %v437 = vadd.f32 %v185, %v300
  %v438 = vadd.f32 %v188, %v303
  %v439 = vadd.f32 %v193, %v308
  %v440 = vadd.f32 %v196, %v311
  %v441 = vadd.f32 %v429, %v383
  %v442 = vadd.f32 %v430, %v386
  %v443 = vadd.f32 %v431, %v391
  %v444 = vadd.f32 %v432, %v394
  %v445 = vadd.f32 %v433, %v399
  %v446 = vadd.f32 %v434, %v402
  %v447 = vadd.f32 %v435, %v407
  %v448 = vadd.f32 %v436, %v410
  %v449 = vadd.f32 %v437, %v415
  %v450 = vadd.f32 %v438, %v418
  %v451 = vadd.f32 %v439, %v423
  %v452 = vadd.f32 %v440, %v426
  %v453 = vld [vmem:[%s2] sm:$0x1]
  %v455 = vlaneseq
  %v456 = vshrl.u32 %v455, 7
  %v457 = vsub.s32 0, %v456
  %v458 = vrot.slane %v453, %v457
  %v460 = vadd.f32 %v441, %v458
  %v461 = vadd.f32 %v442, %v458
  %v462 = vadd.f32 %v443, %v458
  %v463 = vadd.f32 %v444, %v458
  %v464 = vadd.f32 %v445, %v458
  %v465 = vadd.f32 %v446, %v458
  %v466 = vadd.f32 %v447, %v458
  %v467 = vadd.f32 %v448, %v458
  %v468 = vadd.f32 %v449, %v458
  %v469 = vadd.f32 %v450, %v458
  %v470 = vadd.f32 %v451, %v458
  %v471 = vadd.f32 %v452, %v458
  %v472 = vmax.f32 %v460, 0.0
  %v473 = vmax.f32 %v461, 0.0
  %v474 = vmax.f32 %v462, 0.0
  %v475 = vmax.f32 %v463, 0.0
  %v476 = vmax.f32 %v464, 0.0
  %v477 = vmax.f32 %v465, 0.0
  %v478 = vmax.f32 %v466, 0.0
  %v479 = vmax.f32 %v467, 0.0
  %v480 = vmax.f32 %v468, 0.0
  %v481 = vmax.f32 %v469, 0.0
  %v482 = vmax.f32 %v470, 0.0
  %v483 = vmax.f32 %v471, 0.0
  %v484 = vmax.f32 %v472, %v474
  %v485 = vmax.f32 %v473, %v475
  %v486 = vmax.f32 %v484, %v476
  %v487 = vmax.f32 %v485, %v477
  %v488 = vmax.f32 %v486, %v478
  %v489 = vmax.f32 %v487, %v479
  %v490 = vmax.f32 %v488, %v480
  %v491 = vmax.f32 %v489, %v481
  %v492 = vmax.f32 %v490, %v482
  %v493 = vmax.f32 %v491, %v483
  %v494 = vld [vmem:[%s3] sm:$0xff]
  %v495 = vld [vmem:[%s3 + $0x8] sm:$0xff]
  %v496 = vld [vmem:[%s4] sm:$0x1]
  %v498 = vlaneseq
  %v499 = vshrl.u32 %v498, 7
  %v500 = vsub.s32 0, %v499
  %v501 = vrot.slane %v496, %v500
  %vm503 = vcmask 130048
  %v505 = vsel %vm503, %v492, 0
  %v508 = vsel %vm503, %v493, 0
  %510 = vmatprep.subr.mxu0 0.0
  %511 = vmatpush1.msra.mxu0 0.0
  %512 = vmatprep.subr.mxu0 0.0
  %513 = vmatpush1.msra.mxu0 0.0
  %514 = vmatprep.subr.mxu0 0.0
  %515 = vmatpush1.msra.mxu0 0.0
  %516 = vmatprep.subr.mxu0 0.0
  %517 = vmatpush1.msra.mxu0 0.0
  %518 = vmatprep.subr.mxu0 0.0
  %519 = vmatpush1.msra.mxu0 0.0
  %520 = vmatprep.subr.mxu0 0.0
  %521 = vmatpush1.msra.mxu0 0.0
  %522 = vmatprep.subr.mxu0 0.0
  %523 = vmatpush1.msra.mxu0 0.0
  %524 = vmatprep.subr.mxu0 0.0
  %525 = vmatpush1.msra.mxu0 0.0
  %526 = vmatprep.subr.mxu0 0.0
  %527 = vmatpush1.msra.mxu0 0.0
  %528 = vmatprep.subr.mxu0 0.0
  %529 = vmatpush1.msra.mxu0 0.0
  %530 = vmatprep.subr.mxu0 0.0
  %531 = vmatpush1.msra.mxu0 0.0
  %532 = vmatprep.subr.mxu0 0.0
  %533 = vmatpush1.msra.mxu0 0.0
  %534 = vmatprep.subr.mxu0 0.0
  %535 = vmatpush1.msra.mxu0 0.0
  %536 = vmatprep.subr.mxu0 0.0
  %537 = vmatpush1.msra.mxu0 0.0
  %538 = vmatprep.subr.mxu0 0.0
  %539 = vmatpush1.msra.mxu0 %v495
  %540 = vmatprep.subr.mxu0 0.0
  %541 = vmatpush1.msra.mxu0 %v494
  %542 = vmatprep.subr.mxu0 0.0
  %543 = vmatpush2.msra.mxu0 0.0
  %544 = vmatprep.subr.mxu0 0.0
  %545 = vmatpush2.msra.mxu0 0.0
  %546 = vmatprep.subr.mxu0 0.0
  %547 = vmatpush2.msra.mxu0 0.0
  %548 = vmatprep.subr.mxu0 0.0
  %549 = vmatpush2.msra.mxu0 0.0
  %550 = vmatprep.subr.mxu0 0.0
  %551 = vmatpush2.msra.mxu0 0.0
  %552 = vmatprep.subr.mxu0 0.0
  %553 = vmatpush2.msra.mxu0 0.0
  %554 = vmatprep.subr.mxu0 0.0
  %555 = vmatpush2.msra.mxu0 0.0
  %556 = vmatprep.subr.mxu0 0.0
  %557 = vmatpush2.msra.mxu0 0.0
  %558 = vmatprep.subr.mxu0 0.0
  %559 = vmatpush2.msra.mxu0 0.0
  %560 = vmatprep.subr.mxu0 0.0
  %561 = vmatpush2.msra.mxu0 0.0
  %562 = vmatprep.subr.mxu0 0.0
  %563 = vmatpush2.msra.mxu0 0.0
  %564 = vmatprep.subr.mxu0 0.0
  %565 = vmatpush2.msra.mxu0 0.0
  %566 = vmatprep.subr.mxu0 0.0
  %567 = vmatpush2.msra.mxu0 0.0
  %568 = vmatprep.subr.mxu0 0.0
  %569 = vmatpush2.msra.mxu0 0.0
  %570 = vmatprep.subr.mxu0 0.0
  %571 = vmatpush2.msra.mxu0 0.0
  %572 = vmatprep.subr.mxu0 0.0
  %573 = vmatpush2.msra.mxu0 0.0
  %574 = vmatprep.mubr.f32.mxu0 0.0
  %575 = vmatmul.mubr.f32.gmra.mxu0 %v505
  %v576 = vpop.f32.mrf.mxu0
  %v577 = vadd.f32 %v501, %v576
  %v578 = vpop.f32.mrf.mxu0
  %579 = vmatprep.mubr.f32.mxu0 0.0
  %580 = vmatmul.mubr.f32.gmra.mxu0 %v508
  %v581 = vpop.f32.mrf.mxu0
  %v582 = vadd.f32 %v501, %v581
  %v583 = vpop.f32.mrf.mxu0
  %584 = vdwg.mxu0
  %vm585 = vcmask 15360
  %v586 = vsel %vm585, %v577, -inf
  %587 = vmax.xlane.f32.xlu0 %v586
  %v588 = vpop.xlane.xlu0 %587
  %v589 = vsel %vm585, %v582, -inf
  %590 = vmax.xlane.f32.xlu0 %v589
  %v591 = vpop.xlane.xlu0 %590
  %v592 = vsub.f32 %v577, %v588
  %v593 = vsub.f32 %v582, %v591
  %v594 = vmul.f32 %v592, 1.442695
  %v595 = vpow.pop %v594
  %v596 = vmul.f32 %v593, 1.442695
  %v597 = vpow.pop %v596
  %v598 = vsel %vm585, %v595, 0.0
  %599 = vadd.xlane.f32.xlu0 %v598
  %v600 = vpop.xlane.xlu0 %599
  %v601 = vsel %vm585, %v597, 0.0
  %602 = vadd.xlane.f32.xlu0 %v601
  %v603 = vpop.xlane.xlu0 %602
  %v604 = vlog2.pop %v600
  %v605 = vmul.f32 %v604, 0.6931472
  %v606 = vlog2.pop %v603
  %v607 = vmul.f32 %v606, 0.6931472
  %v608 = vadd.f32 %v588, %v605
  %v609 = vadd.f32 %v591, %v607
  %v610 = vsub.f32 %v577, %v608
  %v611 = vsub.f32 %v582, %v609
  %612 = vst.msk [vmem:[%s5] sm:$0xff] %vm585, %v610
  %613 = vst.msk [vmem:[%s5 + $0x8] sm:$0xff] %vm585, %v611
  // Predicated region
  $region22: #{textcnn_forward.1} parent=0 // pred_check
    _
  $region23: #{textcnn_forward.1} parent=0 // pred_check_branch
    %615 = sbr.rel (0) target = $region25
  $region24: #{textcnn_forward.1} parent=0 // pred_region
    _
  $region25: #{textcnn_forward.1} parent=0 // pred_fallthru
    _
  // Predicated region
  $region26: #{textcnn_forward.1} parent=0 // pred_check
    _
  $region27: #{textcnn_forward.1} parent=0 // pred_check_branch
    %617 = sbr.rel (0) target = $region29
  $region28: #{textcnn_forward.1} parent=0 // pred_region
    _
  $region29: #{textcnn_forward.1} parent=0 // pred_fallthru
    _

</llo_original>
